<compile_context>
chip_gen: v7x
topology: tpu7x:2x2x1
jax: 0.10.0
libtpu: 0.0.40
codegen_flags: <defaults>
</compile_context>

<pallas_src>
import jax
import jax.numpy as jnp
from jax import lax
from jax.experimental import pallas as pl
from jax.experimental.pallas import tpu as pltpu

# ----- small synthetic-BERT config (shrunk from 768/12/12 for the demo) -----
HIDDEN = 128          # BERT hidden size (768 in the real model)
N_HEADS = 2
HEAD_DIM = HIDDEN // N_HEADS
N_LAYERS = 2
INTERMEDIATE = 4 * HIDDEN
VOCAB = 128
TYPE_VOCAB = 2
MAX_POS = 64
N_LABELS = 55         # matches torch.nn.Linear(768, 55) output dim
N_LABELS_PAD = 128    # lane-dense padded classifier width (sliced back to 55)
LN_EPS = 1e-12


# --------------------------- in-kernel helpers -------------------------------
def _gelu(x):
    # tanh-approximate GELU (EUP-friendly).
    # TODO(synk): HF BERT uses exact erf-GELU; tanh approx deviates slightly.
    return 0.5 * x * (1.0 + jnp.tanh(0.7978845608028654 * (x + 0.044715 * x * x * x)))


def _layernorm(x, g, b):
    # x: [S, H] f32; g, b: [1, H] f32
    mean = jnp.mean(x, axis=-1, keepdims=True)
    xc = x - mean
    var = jnp.mean(xc * xc, axis=-1, keepdims=True)
    inv = lax.rsqrt(var + LN_EPS)
    return xc * inv * g + b


def _attention(qkv, bias):
    """qkv: [S, 3H] f32 (q already scaled); bias: [1, S] additive. -> [S, H] f32."""
    q = qkv[:, :HIDDEN]
    k = qkv[:, HIDDEN:2 * HIDDEN]
    v = qkv[:, 2 * HIDDEN:3 * HIDDEN]
    outs = []
    for h in range(N_HEADS):                   # static unroll; tiny S in the demo
        lo = h * HEAD_DIM
        qh = q[:, lo:lo + HEAD_DIM].astype(jnp.bfloat16)
        kh = k[:, lo:lo + HEAD_DIM].astype(jnp.bfloat16)
        vh = v[:, lo:lo + HEAD_DIM].astype(jnp.bfloat16)
        s = lax.dot_general(qh, kh, (((1,), (1,)), ((), ())),
                            preferred_element_type=jnp.float32)
        s = s + bias                            # [1, S] broadcasts over query rows
        s = s - jnp.max(s, axis=-1, keepdims=True)
        p = jnp.exp(s)
        inv = pl.reciprocal(jnp.sum(p, axis=-1, keepdims=True), approx=True)
        o_h = jnp.dot(p.astype(jnp.bfloat16), vh,
                      preferred_element_type=jnp.float32) * inv
        outs.append(o_h)
    return jnp.concatenate(outs, axis=-1)       # [S, H] f32


def _layer_core(x_ref, bias_ref, qkvw_ref, qkvb_ref, ow_ref, ob_ref,
                ln1g_ref, ln1b_ref, w1_ref, b1_ref, w2_ref, b2_ref,
                ln2g_ref, ln2b_ref):
    """One full encoder layer for a single batch element. Returns x2 [S, H] f32."""
    x_bf = x_ref[...]                           # [S, H] bf16 hidden state
    x = x_bf.astype(jnp.float32)
    bias = bias_ref[...]                        # [1, S] f32 additive mask

    # --- self-attention ---
    qkv = jnp.dot(x_bf, qkvw_ref[...],
                  preferred_element_type=jnp.float32) + qkvb_ref[...]
    scale = 1.0 / (HEAD_DIM ** 0.5)
    qkv = jnp.concatenate([qkv[:, :HIDDEN] * scale, qkv[:, HIDDEN:]], axis=-1)
    ctx = _attention(qkv, bias)                 # [S, H] f32
    ao = jnp.dot(ctx.astype(jnp.bfloat16), ow_ref[...],
                 preferred_element_type=jnp.float32) + ob_ref[...]
    x1 = _layernorm(ao + x, ln1g_ref[...], ln1b_ref[...])

    # --- FFN (intermediate stays in VMEM/vregs, never hits HBM) ---
    ff = jnp.dot(x1.astype(jnp.bfloat16), w1_ref[...],
                 preferred_element_type=jnp.float32) + b1_ref[...]
    ff = _gelu(ff)
    ff2 = jnp.dot(ff.astype(jnp.bfloat16), w2_ref[...],
                  preferred_element_type=jnp.float32) + b2_ref[...]
    return _layernorm(ff2 + x1, ln2g_ref[...], ln2b_ref[...])


# --------------------------- Pallas kernels ---------------------------------
def _emb_ln_kernel(x_ref, g_ref, b_ref, o_ref):
    o_ref[...] = _layernorm(x_ref[...], g_ref[...], b_ref[...]).astype(o_ref.dtype)


def _layer_kernel(x_ref, bias_ref, qkvw_ref, qkvb_ref, ow_ref, ob_ref,
                  ln1g_ref, ln1b_ref, w1_ref, b1_ref, w2_ref, b2_ref,
                  ln2g_ref, ln2b_ref, o_ref):
    x2 = _layer_core(x_ref, bias_ref, qkvw_ref, qkvb_ref, ow_ref, ob_ref,
                     ln1g_ref, ln1b_ref, w1_ref, b1_ref, w2_ref, b2_ref,
                     ln2g_ref, ln2b_ref)
    o_ref[...] = x2.astype(o_ref.dtype)         # bf16 hidden-state store


def _layer_head_kernel(x_ref, bias_ref, qkvw_ref, qkvb_ref, ow_ref, ob_ref,
                       ln1g_ref, ln1b_ref, w1_ref, b1_ref, w2_ref, b2_ref,
                       ln2g_ref, ln2b_ref, pw_ref, pb_ref, cw_ref, cb_ref,
                       logits_ref):
    """Last encoder layer fused with pooler(tanh) + Dropout(eval) + classifier."""
    x2 = _layer_core(x_ref, bias_ref, qkvw_ref, qkvb_ref, ow_ref, ob_ref,
                     ln1g_ref, ln1b_ref, w1_ref, b1_ref, w2_ref, b2_ref,
                     ln2g_ref, ln2b_ref)
    # Compute pooler over all S rows (avoids a 1-row MXU pass), keep row 0 (CLS).
    pooled = jnp.tanh(jnp.dot(x2.astype(jnp.bfloat16), pw_ref[...],
                              preferred_element_type=jnp.float32) + pb_ref[...])
    # l2 = Dropout(0.2): identity at inference (eval mode).
    logits = jnp.dot(pooled.astype(jnp.bfloat16), cw_ref[...],
                     preferred_element_type=jnp.float32) + cb_ref[...]
    logits_ref[...] = logits[0:1, :]


# ------------------------------ wrappers -------------------------------------
def embed_layernorm(x, gamma, beta):
    """x: [M, H] f32 -> LayerNorm -> [M, H] bf16."""
    M, H = x.shape
    tm = M if M <= 256 else 256
    return pl.pallas_call(
        _emb_ln_kernel,
        out_shape=jax.ShapeDtypeStruct((M, H), jnp.bfloat16),
        grid=(pl.cdiv(M, tm),),
        in_specs=[pl.BlockSpec((tm, H), lambda i: (i, 0)),
                  pl.BlockSpec((1, H), lambda i: (0, 0)),
                  pl.BlockSpec((1, H), lambda i: (0, 0))],
        out_specs=pl.BlockSpec((tm, H), lambda i: (i, 0)),
        compiler_params=pltpu.CompilerParams(dimension_semantics=("parallel",)),
    )(x, gamma, beta)


def _layer_specs(S):
    H, I, Np = HIDDEN, INTERMEDIATE, N_LABELS_PAD
    wspec = lambda shape: pl.BlockSpec(shape, lambda b: (0, 0))
    xspec = pl.BlockSpec((None, S, H), lambda b: (b, 0, 0))
    bspec = pl.BlockSpec((None, 1, S), lambda b: (b, 0, 0))
    base = [xspec, bspec,
            wspec((H, 3 * H)), wspec((1, 3 * H)),          # qkv
            wspec((H, H)), wspec((1, H)),                  # attn out
            wspec((1, H)), wspec((1, H)),                  # ln1
            wspec((H, I)), wspec((1, I)),                  # w1
            wspec((I, H)), wspec((1, H)),                  # w2
            wspec((1, H)), wspec((1, H))]                  # ln2
    head = [wspec((H, H)), wspec((1, H)),                  # pooler
            wspec((H, Np)), wspec((1, Np))]                # classifier (padded)
    return xspec, base, head


def encoder_layer(x, bias, layer):
    """x: [B, S, H] bf16; bias: [B, 1, S] f32 -> new hidden [B, S, H] bf16."""
    B, S, H = x.shape
    xspec, in_specs, _ = _layer_specs(S)
    args = [x, bias, layer["qkv_w"], layer["qkv_b"], layer["o_w"], layer["o_b"],
            layer["ln1_g"], layer["ln1_b"], layer["w1"], layer["b1"],
            layer["w2"], layer["b2"], layer["ln2_g"], layer["ln2_b"]]
    return pl.pallas_call(
        _layer_kernel,
        out_shape=jax.ShapeDtypeStruct((B, S, H), jnp.bfloat16),
        grid=(B,),
        in_specs=in_specs,
        out_specs=xspec,
        compiler_params=pltpu.CompilerParams(dimension_semantics=("parallel",)),
    )(*args)


def encoder_layer_with_head(x, bias, layer, pool_w, pool_b, cls_w_pad, cls_b_pad):
    """Last layer + pooler + classifier; returns padded logits [B, 1, N_LABELS_PAD]."""
    B, S, H = x.shape
    _, base_specs, head_specs = _layer_specs(S)
    args = [x, bias, layer["qkv_w"], layer["qkv_b"], layer["o_w"], layer["o_b"],
            layer["ln1_g"], layer["ln1_b"], layer["w1"], layer["b1"],
            layer["w2"], layer["b2"], layer["ln2_g"], layer["ln2_b"],
            pool_w, pool_b, cls_w_pad, cls_b_pad]
    return pl.pallas_call(
        _layer_head_kernel,
        out_shape=jax.ShapeDtypeStruct((B, 1, N_LABELS_PAD), jnp.float32),
        grid=(B,),
        in_specs=base_specs + head_specs,
        out_specs=pl.BlockSpec((None, 1, N_LABELS_PAD), lambda b: (b, 0, 0)),
        compiler_params=pltpu.CompilerParams(dimension_semantics=("parallel",)),
    )(*args)


# ------------------------- parameter construction ---------------------------
def init_params(key):
    def nrm(k, shape, scale=0.02):
        return scale * jax.random.normal(k, shape, dtype=jnp.float32)

    keys = iter(jax.random.split(key, 8 + N_LAYERS * 8))
    cls_w = nrm(jax.random.fold_in(key, 7), (HIDDEN, N_LABELS))
    params = {
        "word_emb": nrm(next(keys), (VOCAB, HIDDEN)),
        "pos_emb": nrm(next(keys), (MAX_POS, HIDDEN)),
        "type_emb": nrm(next(keys), (TYPE_VOCAB, HIDDEN)),
        "emb_ln_g": jnp.ones((1, HIDDEN), jnp.float32),
        "emb_ln_b": jnp.zeros((1, HIDDEN), jnp.float32),
        "pool_w": nrm(next(keys), (HIDDEN, HIDDEN)).astype(jnp.bfloat16),
        "pool_b": jnp.zeros((1, HIDDEN), jnp.float32),
        # classifier weight padded 55 -> 128 lanes (zeros); sliced after the kernel
        "cls_w_pad": jnp.pad(cls_w, ((0, 0), (0, N_LABELS_PAD - N_LABELS))
                             ).astype(jnp.bfloat16),
        "cls_b_pad": jnp.zeros((1, N_LABELS_PAD), jnp.float32),
        "layers": [],
    }
    for _ in range(N_LAYERS):
        qw = nrm(next(keys), (HIDDEN, HIDDEN))
        kw = nrm(next(keys), (HIDDEN, HIDDEN))
        vw = nrm(next(keys), (HIDDEN, HIDDEN))
        layer = {
            # fused Q|K|V projection: one [H, 3H] matmul per layer
            "qkv_w": jnp.concatenate([qw, kw, vw], axis=1).astype(jnp.bfloat16),
            "qkv_b": jnp.zeros((1, 3 * HIDDEN), jnp.float32),
            "o_w": nrm(next(keys), (HIDDEN, HIDDEN)).astype(jnp.bfloat16),
            "o_b": jnp.zeros((1, HIDDEN), jnp.float32),
            "ln1_g": jnp.ones((1, HIDDEN), jnp.float32),
            "ln1_b": jnp.zeros((1, HIDDEN), jnp.float32),
            "w1": nrm(next(keys), (HIDDEN, INTERMEDIATE)).astype(jnp.bfloat16),
            "b1": jnp.zeros((1, INTERMEDIATE), jnp.float32),
            "w2": nrm(next(keys), (INTERMEDIATE, HIDDEN)).astype(jnp.bfloat16),
            "b2": jnp.zeros((1, HIDDEN), jnp.float32),
            "ln2_g": jnp.ones((1, HIDDEN), jnp.float32),
            "ln2_b": jnp.zeros((1, HIDDEN), jnp.float32),
        }
        params["layers"].append(layer)
    return params


# ------------------------------ forward pass --------------------------------
def bert_class_forward(params, ids, mask, token_type_ids):
    """Equivalent of BERTClass.forward(ids, mask, token_type_ids) -> [B, 55]."""
    B, S = ids.shape

    # Embeddings (gather is plain-JAX glue) + LayerNorm (Pallas, bf16 output)
    x = (params["word_emb"][ids]
         + params["pos_emb"][:S][None, :, :]
         + params["type_emb"][token_type_ids])
    x2 = embed_layernorm(x.reshape(B * S, HIDDEN),
                         params["emb_ln_g"], params["emb_ln_b"])
    x2 = x2.reshape(B, S, HIDDEN)

    # Additive attention-mask bias, as in HF BERT: (1 - mask) * -1e9
    bias = ((1.0 - mask.astype(jnp.float32)) * -1e9).reshape(B, 1, S)

    # One fused pallas_call per encoder layer; last layer also fuses
    # pooler (tanh on [CLS]) + Dropout(eval, identity) + Linear(H, 55).
    for layer in params["layers"][:-1]:
        x2 = encoder_layer(x2, bias, layer)
    logits_pad = encoder_layer_with_head(
        x2, bias, params["layers"][-1],
        params["pool_w"], params["pool_b"],
        params["cls_w_pad"], params["cls_b_pad"])

    return logits_pad[:, 0, :N_LABELS]


# ---------------------------------- main -------------------------------------
if __name__ == "__main__":
    key = jax.random.PRNGKey(0)
    pkey, ikey = jax.random.split(key)
    params = init_params(pkey)

    B, S = 2, 8
    ids = jax.random.randint(ikey, (B, S), 0, VOCAB, dtype=jnp.int32)
    mask = jnp.ones((B, S), dtype=jnp.int32)
    token_type_ids = jnp.zeros((B, S), dtype=jnp.int32)

    out = bert_class_forward(params, ids, mask, token_type_ids)
    out = jax.block_until_ready(out)
    assert out.shape == (B, N_LABELS) and out.dtype == jnp.float32
    assert bool(jnp.all(jnp.isfinite(out)))
    print("KERNEL_OK")
</pallas_src>

<mosaic_0001>
module attributes {stable_mosaic.version = 11 : i64} {
  func.func @_emb_ln_kernel(%arg0: i32, %arg1: memref<16x128xf32, #tpu.memory_space<vmem>>, %arg2: memref<1x128xf32, #tpu.memory_space<vmem>>, %arg3: memref<1x128xf32, #tpu.memory_space<vmem>>, %arg4: memref<16x128xbf16, #tpu.memory_space<vmem>>) attributes {dimension_semantics = [#tpu.dimension_semantics<parallel>], iteration_bounds = array<i64: 1>, scalar_prefetch = 0 : i64, scratch_operands = 0 : i64, tpu.core_type = #tpu.core_type<tc>, window_params = [{transform_indices = @transform_0, window_bounds = array<i64: 16, 128>}, {pipeline_mode = #tpu.pipeline_mode<synchronous>, transform_indices = @transform_1, window_bounds = array<i64: 1, 128>}, {pipeline_mode = #tpu.pipeline_mode<synchronous>, transform_indices = @transform_2, window_bounds = array<i64: 1, 128>}, {transform_indices = @transform_3, window_bounds = array<i64: 16, 128>}]} {
    %c0 = arith.constant 0 : index
    %c0_0 = arith.constant 0 : index
    %0 = vector.load %arg1[%c0, %c0_0] : memref<16x128xf32, #tpu.memory_space<vmem>>, vector<16x128xf32>
    %c0_1 = arith.constant 0 : index
    %c0_2 = arith.constant 0 : index
    %1 = vector.load %arg2[%c0_1, %c0_2] : memref<1x128xf32, #tpu.memory_space<vmem>>, vector<1x128xf32>
    %c0_3 = arith.constant 0 : index
    %c0_4 = arith.constant 0 : index
    %2 = vector.load %arg3[%c0_3, %c0_4] : memref<1x128xf32, #tpu.memory_space<vmem>>, vector<1x128xf32>
    %cst = arith.constant dense<0.000000e+00> : vector<16xf32>
    %3 = vector.multi_reduction <add>, %0, %cst [1] : vector<16x128xf32> to vector<16xf32>
    %4 = vector.shape_cast %3 : vector<16xf32> to vector<16x1xf32>
    %cst_5 = arith.constant 1.280000e+02 : f32
    %5 = vector.broadcast %cst_5 : f32 to vector<16x1xf32>
    %6 = arith.divf %4, %5 : vector<16x1xf32>
    %7 = vector.broadcast %6 : vector<16x1xf32> to vector<16x128xf32>
    %8 = arith.subf %0, %7 : vector<16x128xf32>
    %9 = arith.mulf %8, %8 : vector<16x128xf32>
    %cst_6 = arith.constant dense<0.000000e+00> : vector<16xf32>
    %10 = vector.multi_reduction <add>, %9, %cst_6 [1] : vector<16x128xf32> to vector<16xf32>
    %11 = vector.shape_cast %10 : vector<16xf32> to vector<16x1xf32>
    %cst_7 = arith.constant 1.280000e+02 : f32
    %12 = vector.broadcast %cst_7 : f32 to vector<16x1xf32>
    %13 = arith.divf %11, %12 : vector<16x1xf32>
    %cst_8 = arith.constant 9.99999996E-13 : f32
    %14 = vector.broadcast %cst_8 : f32 to vector<16x1xf32>
    %15 = arith.addf %13, %14 : vector<16x1xf32>
    %16 = math.rsqrt %15 : vector<16x1xf32>
    %17 = vector.broadcast %16 : vector<16x1xf32> to vector<16x128xf32>
    %18 = arith.mulf %8, %17 : vector<16x128xf32>
    %19 = vector.broadcast %1 : vector<1x128xf32> to vector<16x128xf32>
    %20 = arith.mulf %18, %19 : vector<16x128xf32>
    %21 = vector.broadcast %2 : vector<1x128xf32> to vector<16x128xf32>
    %22 = arith.addf %20, %21 : vector<16x128xf32>
    %23 = arith.truncf %22 : vector<16x128xf32> to vector<16x128xbf16>
    %c0_9 = arith.constant 0 : index
    %c0_10 = arith.constant 0 : index
    %24 = vector.load %arg4[%c0_9, %c0_10] : memref<16x128xbf16, #tpu.memory_space<vmem>>, vector<16x128xbf16>
    tpu.vector_store %arg4[%c0_9, %c0_10], %23 {strides = array<i32>} : memref<16x128xbf16, #tpu.memory_space<vmem>>, vector<16x128xbf16>,
    return
  }
  func.func @transform_0(%arg0: i32) -> (i32, i32) {
    %c0_i32 = arith.constant 0 : i32
    %c0_i32_0 = arith.constant 0 : i32
    return %arg0, %c0_i32 : i32, i32
  }
  func.func @transform_1(%arg0: i32) -> (i32, i32) {
    %c0_i32 = arith.constant 0 : i32
    %c0_i32_0 = arith.constant 0 : i32
    %c0_i32_1 = arith.constant 0 : i32
    return %c0_i32, %c0_i32_0 : i32, i32
  }
  func.func @transform_2(%arg0: i32) -> (i32, i32) {
    %c0_i32 = arith.constant 0 : i32
    %c0_i32_0 = arith.constant 0 : i32
    %c0_i32_1 = arith.constant 0 : i32
    return %c0_i32, %c0_i32_0 : i32, i32
  }
  func.func @transform_3(%arg0: i32) -> (i32, i32) {
    %c0_i32 = arith.constant 0 : i32
    %c0_i32_0 = arith.constant 0 : i32
    return %arg0, %c0_i32 : i32, i32
  }
}

</mosaic_0001>

<llo_original>
// kernel: tpu_custom_call.1
$region0: #{tpu_custom_call.1}
  #allocation0 [shape = 'u32[]', space=smem, size = 0x4, offset = 0x4, fixed_abs, tag = 'smem constant byte address 0x4 - core index']
  #allocation1 [shape = 'u32[144,128]{1,0:T(1,128)}', space=vmem, size = 0x12000, scoped, tag = 'internal scratch']
  %s0 = inlined_call_operand.hbm [shape: f32[16,128], index: 0, kind: input, shape index: {}]
  %s1 = inlined_call_operand.vmem [shape: f32[1,128], index: 1, kind: input, shape index: {}]
  %s2 = inlined_call_operand.vmem [shape: f32[1,128], index: 2, kind: input, shape index: {}]
  %s3 = inlined_call_operand.hbm [shape: bf16[16,128], index: 3, kind: output, shape index: {}]
  %s4 = sld [smem:[#allocation0]]
  $region26: #{tpu_custom_call.1} parent=0
    _
  %s6 = ssub.s32 1, %s4
  %s7 = scalar_select 0, %s6, %s4
  $region1: #{tpu_custom_call.1} parent=0
    #allocation2 [shape = 'u8[8192]{0}', space=vmem, size = 0x2000, scoped, tag = 'input window, operand 0, single buffered']
    #allocation3 [shape = 's32[1]{0}', space=sflag, size = 0x4, scoped, tag = 'scoped memory for tpu_custom_call.1']
    #allocation4 [shape = 's32[1]{0}', space=sflag, size = 0x4, scoped, tag = 'scoped memory for tpu_custom_call.1']
    #allocation5 [shape = 'u8[4096]{0}', space=vmem, size = 0x1000, scoped, tag = 'output window, operand 0, single buffered']
    %8 = vsyncpa [#allocation3], 0
    %9 = vsyncpa [#allocation4], 0
    // Predicated region
    $region2: #{tpu_custom_call.1} parent=1 // pred_check
      _
    $region3: #{tpu_custom_call.1} parent=1 // pred_check_branch
      %11 = sbr.rel (0) target = $region5
    $region4: #{tpu_custom_call.1} parent=1 // pred_region
      %s13 = ssub.s32 256, 256
      %14 = vsyncadd [#allocation3], %s13
      %s15 = sshll.u32 [#allocation2], 4
      %s16 = int_to_ptr.vmem [resolvable:$true] %s15
      %21 = dma.hbm_to_vmem [thread:$0]  %s0, 256, %s16, [#allocation3], 128, 128, 8
    $region5: #{tpu_custom_call.1} parent=1 // pred_fallthru
      _
    // Predicated region
    $region6: #{tpu_custom_call.1} parent=1 // pred_check
      _
    $region7: #{tpu_custom_call.1} parent=1 // pred_check_branch
      %23 = sbr.rel (0) target = $region9
    $region8: #{tpu_custom_call.1} parent=1 // pred_region
      _
    $region9: #{tpu_custom_call.1} parent=1 // pred_fallthru
      _
    // Predicated region
    $region10: #{tpu_custom_call.1} parent=1 // pred_check
      _
    $region11: #{tpu_custom_call.1} parent=1 // pred_check_branch
      %25 = sbr.rel (0) target = $region13
    $region12: #{tpu_custom_call.1} parent=1 // pred_region
      _
    $region13: #{tpu_custom_call.1} parent=1 // pred_fallthru
      _
    // Predicated region
    $region14: #{tpu_custom_call.1} parent=1 // pred_check
      _
    $region15: #{tpu_custom_call.1} parent=1 // pred_check_branch
      %27 = sbr.rel (0) target = $region17
    $region16: #{tpu_custom_call.1} parent=1 // pred_region
      %28 = dma.done [#allocation3], 256
    $region17: #{tpu_custom_call.1} parent=1 // pred_fallthru
      _
    %v29 = vld [vmem:[#allocation2] sm:$0xff]
    %v30 = vld [vmem:[#allocation2 + $0x8] sm:$0xff]
    %v31 = vld [vmem:[%s1] sm:$0x1]
    %v32 = vld [vmem:[%s2] sm:$0x1]
    %33 = vadd.xlane.f32.xlu0 %v29
    %v34 = vpop.xlane.xlu0 %33
    %35 = vadd.xlane.f32.xlu0 %v30
    %v36 = vpop.xlane.xlu0 %35
    %v37 = vrcp.pop 128.0
    %v38 = vmul.f32 %v34, %v37
    %v39 = vmul.f32 %v36, %v37
    %v40 = vsub.f32 %v29, %v38
    %v41 = vsub.f32 %v30, %v39
    %v42 = vmul.f32 %v40, %v40
    %v43 = vmul.f32 %v41, %v41
    %44 = vadd.xlane.f32.xlu0 %v42
    %v45 = vpop.xlane.xlu0 %44
    %46 = vadd.xlane.f32.xlu0 %v43
    %v47 = vpop.xlane.xlu0 %46
    %v48 = vmul.f32 %v45, %v37
    %v49 = vmul.f32 %v47, %v37
    %v50 = vadd.f32 %v48, 1e-12
    %v51 = vadd.f32 %v49, 1e-12
    %v52 = vrsqrt.pop %v50
    %v53 = vrsqrt.pop %v51
    %v54 = vmul.f32 %v40, %v52
    %v55 = vmul.f32 %v41, %v53
    %v57 = vlaneseq
    %v58 = vshrl.u32 %v57, 7
    %v59 = vsub.s32 0, %v58
    %v60 = vrot.slane %v31, %v59
    %v62 = vmul.f32 %v54, %v60
    %v63 = vmul.f32 %v55, %v60
    %v65 = vlaneseq
    %v66 = vshrl.u32 %v65, 7
    %v67 = vsub.s32 0, %v66
    %v68 = vrot.slane %v32, %v67
    %v70 = vadd.f32 %v62, %v68
    %v71 = vadd.f32 %v63, %v68
    %v72 = vpack.c.bf16 %v71, %v70
    %v74 = vunpack.c.l.b16 %v72
    %v75 = vunpack.c.h.b16 %v72
    %v76 = vpack.c.b16 %v74, %v74
    %v77 = vpack.c.b16 %v75, %v75
    %80 = vst [vmem:[#allocation5] sm:$0xf] %v76
    %81 = vst [vmem:[#allocation5 + $0x4] sm:$0xf] %v77
    // Predicated region
    $region18: #{tpu_custom_call.1} parent=1 // pred_check
      _
    $region19: #{tpu_custom_call.1} parent=1 // pred_check_branch
      %83 = sbr.rel (0) target = $region21
    $region20: #{tpu_custom_call.1} parent=1 // pred_region
      %s85 = ssub.s32 128, 128
      %86 = vsyncadd [#allocation4], %s85
      %s87 = sshll.u32 [#allocation5], 4
      %s88 = int_to_ptr.vmem [resolvable:$true] %s87
      %93 = dma.vmem_to_hbm [thread:$0]  %s88, 128, %s3, [#allocation4], 64, 64, 4
    $region21: #{tpu_custom_call.1} parent=1 // pred_fallthru
      _
    // Predicated region
    $region22: #{tpu_custom_call.1} parent=1 // pred_check
      _
    $region23: #{tpu_custom_call.1} parent=1 // pred_check_branch
      %95 = sbr.rel (0) target = $region25
    $region24: #{tpu_custom_call.1} parent=1 // pred_region
      %96 = dma.done [#allocation4], 128
    $region25: #{tpu_custom_call.1} parent=1 // pred_fallthru
      _
    %97 = vsyncpa [#allocation3], 1
    %98 = vsyncpa [#allocation4], 1

</llo_original>
